<compile_context>
chip_gen: v7x
topology: tpu7x:2x2x1
jax: 0.10.0
libtpu: 0.0.40
codegen_flags: <defaults>
</compile_context>

<pallas_src>
import jax
import jax.numpy as jnp
from jax import lax
from jax.experimental import pallas as pl
from jax.experimental.pallas import tpu as pltpu


# ----------------------------------------------------------------------------
# Tiling constants / limits
# ----------------------------------------------------------------------------
TM, TN, TK = 512, 512, 1024       # large-shape matmul tiles (MXU-friendly)
TR_ADD, TC_ADD = 256, 2048        # large-shape add tiles (lane-dense, ~2 MiB)
_FAST_PATH_BYTES = 8 << 20        # single-block path if operands+output fit
_VMEM_LIMIT = 48 << 20            # headroom under v7x's 64 MiB physical VMEM


def _round_up(x: int, m: int) -> int:
    return (x + m - 1) // m * m


def _pad2d(a: jax.Array, rows: int, cols: int) -> jax.Array:
    r, c = a.shape
    if r == rows and c == cols:
        return a
    return jnp.pad(a, ((0, rows - r), (0, cols - c)))


# ----------------------------------------------------------------------------
# Kernels
# ----------------------------------------------------------------------------
def _matmul_single_kernel(w_ref, x_ref, o_ref):
    """Whole-array weight @ input in one MXU pass (small shapes)."""
    o_ref[...] = jnp.dot(
        w_ref[...], x_ref[...], preferred_element_type=jnp.float32
    ).astype(o_ref.dtype)


def _matmul_tiled_kernel(w_ref, x_ref, o_ref):
    """Tiled weight @ input; accumulate directly into the revisited out tile."""
    @pl.when(pl.program_id(2) == 0)
    def _():
        o_ref[...] = jnp.zeros_like(o_ref)

    o_ref[...] += jnp.dot(
        w_ref[...], x_ref[...], preferred_element_type=jnp.float32
    ).astype(o_ref.dtype)


def _add_kernel(w_ref, x_ref, o_ref):
    """Elementwise weight + input (used for both fast and tiled paths)."""
    o_ref[...] = (w_ref[...] + x_ref[...]).astype(o_ref.dtype)


# ----------------------------------------------------------------------------
# Specialized pallas_call wrappers
# ----------------------------------------------------------------------------
def _matmul_pallas(weight: jax.Array, x: jax.Array) -> jax.Array:
    n, k = weight.shape
    _, p = x.shape
    itemsize = jnp.dtype(weight.dtype).itemsize
    total_bytes = (n * k + k * p + n * p) * itemsize

    if total_bytes <= _FAST_PATH_BYTES:
        # Single-block fast path: full-array blocks are exempt from the
        # (8,128) divisibility rule, so no padding and no grid overhead.
        return pl.pallas_call(
            _matmul_single_kernel,
            out_shape=jax.ShapeDtypeStruct((n, p), weight.dtype),
            in_specs=[
                pl.BlockSpec((n, k), lambda: (0, 0)),
                pl.BlockSpec((k, p), lambda: (0, 0)),
            ],
            out_specs=pl.BlockSpec((n, p), lambda: (0, 0)),
            compiler_params=pltpu.CompilerParams(
                vmem_limit_bytes=_VMEM_LIMIT,
            ),
        )(weight, x)

    # Tiled path for large shapes.
    tm = min(TM, _round_up(n, 8))
    tk = min(TK, _round_up(k, 128))
    tn = min(TN, _round_up(p, 128))

    n_p, k_p, p_p = _round_up(n, tm), _round_up(k, tk), _round_up(p, tn)
    w_pad = _pad2d(weight, n_p, k_p)     # zero-padding K contributes nothing
    x_pad = _pad2d(x, k_p, p_p)

    out = pl.pallas_call(
        _matmul_tiled_kernel,
        out_shape=jax.ShapeDtypeStruct((n_p, p_p), weight.dtype),
        grid_spec=pltpu.PrefetchScalarGridSpec(
            num_scalar_prefetch=0,
            grid=(n_p // tm, p_p // tn, k_p // tk),
            in_specs=[
                pl.BlockSpec((tm, tk), lambda i, j, kk: (i, kk)),
                pl.BlockSpec((tk, tn), lambda i, j, kk: (kk, j)),
            ],
            out_specs=pl.BlockSpec((tm, tn), lambda i, j, kk: (i, j)),
        ),
        compiler_params=pltpu.CompilerParams(
            dimension_semantics=("parallel", "parallel", "arbitrary"),
            vmem_limit_bytes=_VMEM_LIMIT,
        ),
    )(w_pad, x_pad)
    if n_p == n and p_p == p:
        return out
    return out[:n, :p]


def _add_pallas(weight: jax.Array, x: jax.Array) -> jax.Array:
    n, m = weight.shape
    itemsize = jnp.dtype(weight.dtype).itemsize
    total_bytes = 3 * n * m * itemsize

    if total_bytes <= _FAST_PATH_BYTES:
        # Single-block fast path: no grid, no padding.
        return pl.pallas_call(
            _add_kernel,
            out_shape=jax.ShapeDtypeStruct((n, m), weight.dtype),
            in_specs=[
                pl.BlockSpec((n, m), lambda: (0, 0)),
                pl.BlockSpec((n, m), lambda: (0, 0)),
            ],
            out_specs=pl.BlockSpec((n, m), lambda: (0, 0)),
            compiler_params=pltpu.CompilerParams(
                vmem_limit_bytes=_VMEM_LIMIT,
            ),
        )(weight, x)

    # Tiled, lane-dense streaming path for large shapes (HBM-bound).
    tr = min(TR_ADD, _round_up(n, 8))
    tc = min(TC_ADD, _round_up(m, 128))

    n_p, m_p = _round_up(n, tr), _round_up(m, tc)
    w_pad = _pad2d(weight, n_p, m_p)
    x_pad = _pad2d(x, n_p, m_p)

    out = pl.pallas_call(
        _add_kernel,
        out_shape=jax.ShapeDtypeStruct((n_p, m_p), weight.dtype),
        grid_spec=pltpu.PrefetchScalarGridSpec(
            num_scalar_prefetch=0,
            grid=(n_p // tr, m_p // tc),
            in_specs=[
                pl.BlockSpec((tr, tc), lambda i, j: (i, j)),
                pl.BlockSpec((tr, tc), lambda i, j: (i, j)),
            ],
            out_specs=pl.BlockSpec((tr, tc), lambda i, j: (i, j)),
        ),
        compiler_params=pltpu.CompilerParams(
            dimension_semantics=("parallel", "parallel"),
            vmem_limit_bytes=_VMEM_LIMIT,
        ),
    )(w_pad, x_pad)
    if n_p == n and m_p == m:
        return out
    return out[:n, :m]


# ----------------------------------------------------------------------------
# Forward: data-dependent branch resolved in the wrapper (lax.cond)
# ----------------------------------------------------------------------------
@jax.jit
def my_module_forward(weight: jax.Array, x: jax.Array) -> jax.Array:
    n, m = weight.shape
    k, p = x.shape
    # Both branches must share an output shape (matmul: (N,P); add: (N,M)),
    # which — as in the PyTorch module — requires square N == M == P.
    assert m == k, "inner dims must match for the matmul branch"
    assert n == m == p, "N == M and square input required so both branches agree"

    # Global `input.sum() > 0` flag (note: reduction order may differ from
    # PyTorch for sums extremely close to zero).
    flag = jnp.sum(x) > 0
    return lax.cond(flag, _matmul_pallas, _add_pallas, weight, x)


def _reference(weight, x):
    if jnp.sum(x) > 0:
        return weight @ x
    return weight + x


def _check(size, key):
    k_w, k_x = jax.random.split(key)
    weight = jax.random.uniform(k_w, (size, size), dtype=jnp.float32)  # torch.rand
    x_pos = jnp.abs(jax.random.normal(k_x, (size, size), dtype=jnp.float32)) + 0.1
    x_neg = -x_pos

    out_pos = jax.block_until_ready(my_module_forward(weight, x_pos))
    out_neg = jax.block_until_ready(my_module_forward(weight, x_neg))

    ref_pos = _reference(weight, x_pos)
    ref_neg = _reference(weight, x_neg)

    assert out_pos.shape == ref_pos.shape and out_neg.shape == ref_neg.shape
    assert jnp.allclose(out_pos, ref_pos, atol=1e-3, rtol=1e-3)
    assert jnp.allclose(out_neg, ref_neg, atol=1e-3, rtol=1e-3)


if __name__ == "__main__":
    key = jax.random.PRNGKey(0)
    k_small, k_large = jax.random.split(key)

    # Small square size -> exercises the single-block fast path (both branches).
    _check(256, k_small)
    # Larger size -> exercises the tiled matmul (2,2,1) and tiled add (4,1) grids.
    _check(1024, k_large)

    print("KERNEL_OK")
</pallas_src>

<mosaic_0001>
module attributes {stable_mosaic.version = 11 : i64} {
  func.func @_add_kernel(%arg0: memref<256x256xf32, #tpu.memory_space<vmem>>, %arg1: memref<256x256xf32, #tpu.memory_space<vmem>>, %arg2: memref<256x256xf32, #tpu.memory_space<vmem>>) attributes {dimension_semantics = [], scalar_prefetch = 0 : i64, scratch_operands = 0 : i64, tpu.core_type = #tpu.core_type<tc>} {
    %c0 = arith.constant 0 : index
    %c0_0 = arith.constant 0 : index
    %0 = vector.load %arg0[%c0, %c0_0] : memref<256x256xf32, #tpu.memory_space<vmem>>, vector<256x256xf32>
    %c0_1 = arith.constant 0 : index
    %c0_2 = arith.constant 0 : index
    %1 = vector.load %arg1[%c0_1, %c0_2] : memref<256x256xf32, #tpu.memory_space<vmem>>, vector<256x256xf32>
    %2 = arith.addf %0, %1 : vector<256x256xf32>
    %c0_3 = arith.constant 0 : index
    %c0_4 = arith.constant 0 : index
    %3 = vector.load %arg2[%c0_3, %c0_4] : memref<256x256xf32, #tpu.memory_space<vmem>>, vector<256x256xf32>
    tpu.vector_store %arg2[%c0_3, %c0_4], %2 {strides = array<i32>} : memref<256x256xf32, #tpu.memory_space<vmem>>, vector<256x256xf32>,
    return
  }
}

module attributes {stable_mosaic.version = 11 : i64} {
  func.func @_matmul_single_kernel(%arg0: memref<256x256xf32, #tpu.memory_space<vmem>>, %arg1: memref<256x256xf32, #tpu.memory_space<vmem>>, %arg2: memref<256x256xf32, #tpu.memory_space<vmem>>) attributes {dimension_semantics = [], scalar_prefetch = 0 : i64, scratch_operands = 0 : i64, tpu.core_type = #tpu.core_type<tc>} {
    %c0 = arith.constant 0 : index
    %c0_0 = arith.constant 0 : index
    %0 = vector.load %arg0[%c0, %c0_0] : memref<256x256xf32, #tpu.memory_space<vmem>>, vector<256x256xf32>
    %c0_1 = arith.constant 0 : index
    %c0_2 = arith.constant 0 : index
    %1 = vector.load %arg1[%c0_1, %c0_2] : memref<256x256xf32, #tpu.memory_space<vmem>>, vector<256x256xf32>
    %cst = arith.constant dense<0.000000e+00> : vector<256x256xf32>
    %2 = tpu.matmul %0, %1, %cst {dimension_numbers = #tpu.dot_dimension_numbers<[1], [0], [0], [1], [0, 0, 1, 1], [], []>} : vector<256x256xf32>, vector<256x256xf32>, vector<256x256xf32> -> vector<256x256xf32>
    %c0_3 = arith.constant 0 : index
    %c0_4 = arith.constant 0 : index
    %3 = vector.load %arg2[%c0_3, %c0_4] : memref<256x256xf32, #tpu.memory_space<vmem>>, vector<256x256xf32>
    tpu.vector_store %arg2[%c0_3, %c0_4], %2 {strides = array<i32>} : memref<256x256xf32, #tpu.memory_space<vmem>>, vector<256x256xf32>,
    return
  }
}

</mosaic_0001>

<llo_original>
// kernel: branch_0_fun.1
$region0: #{branch_0_fun.1}
  #allocation0 [shape = 'u32[]', space=smem, size = 0x4, offset = 0x4, fixed_abs, tag = 'smem constant byte address 0x4 - core index']
  #allocation1 [shape = 'u32[144,128]{1,0:T(1,128)}', space=vmem, size = 0x12000, scoped, tag = 'internal scratch']
  %s0 = inlined_call_operand.hbm [shape: f32[256,256], index: 0, kind: input, shape index: {}]
  %s1 = inlined_call_operand.vmem [shape: f32[256,256], index: 1, kind: input, shape index: {}]
  %s2 = inlined_call_operand.hbm [shape: f32[256,256], index: 2, kind: output, shape index: {}]
  %s3 = sld [smem:[#allocation0]]
  $region22: #{branch_0_fun.1} parent=0
    _
  %s5 = ssub.s32 1, %s3
  %s6 = scalar_select 0, %s5, %s3
  $region1: #{branch_0_fun.1} parent=0
    #allocation2 [shape = 'u8[262144]{0}', space=vmem, size = 0x40000, scoped, tag = 'input window, operand 0, single buffered']
    #allocation3 [shape = 's32[1]{0}', space=sflag, size = 0x4, scoped, tag = 'scoped memory for branch_0_fun.1']
    #allocation4 [shape = 's32[1]{0}', space=sflag, size = 0x4, scoped, tag = 'scoped memory for branch_0_fun.1']
    #allocation5 [shape = 'u8[262144]{0}', space=vmem, size = 0x40000, scoped, tag = 'output window, operand 0, single buffered']
    %7 = vsyncpa [#allocation3], 0
    %8 = vsyncpa [#allocation4], 0
    // Predicated region
    $region2: #{branch_0_fun.1} parent=1 // pred_check
      _
    $region3: #{branch_0_fun.1} parent=1 // pred_check_branch
      %10 = sbr.rel (0) target = $region5
    $region4: #{branch_0_fun.1} parent=1 // pred_region
      %s12 = ssub.s32 8192, 8192
      %13 = vsyncadd [#allocation3], %s12
      %s14 = sshll.u32 [#allocation2], 4
      %s15 = int_to_ptr.vmem [resolvable:$true] %s14
      %20 = dma.hbm_to_vmem [thread:$0]  %s0, 8192, %s15, [#allocation3], 256, 256, 16
    $region5: #{branch_0_fun.1} parent=1 // pred_fallthru
      _
    // Predicated region
    $region6: #{branch_0_fun.1} parent=1 // pred_check
      _
    $region7: #{branch_0_fun.1} parent=1 // pred_check_branch
      %22 = sbr.rel (0) target = $region9
    $region8: #{branch_0_fun.1} parent=1 // pred_region
      _
    $region9: #{branch_0_fun.1} parent=1 // pred_fallthru
      _
    // Predicated region
    $region10: #{branch_0_fun.1} parent=1 // pred_check
      _
    $region11: #{branch_0_fun.1} parent=1 // pred_check_branch
      %24 = sbr.rel (0) target = $region13
    $region12: #{branch_0_fun.1} parent=1 // pred_region
      %25 = dma.done [#allocation3], 8192
    $region13: #{branch_0_fun.1} parent=1 // pred_fallthru
      _
    %v26 = vld [vmem:[#allocation2] sm:$0xff]
    %v27 = vld [vmem:[#allocation2 + $0x8] sm:$0xff]
    %v28 = vld [vmem:[#allocation2 + $0x10] sm:$0xff]
    %v29 = vld [vmem:[#allocation2 + $0x18] sm:$0xff]
    %v30 = vld [vmem:[#allocation2 + $0x20] sm:$0xff]
    %v31 = vld [vmem:[#allocation2 + $0x28] sm:$0xff]
    %v32 = vld [vmem:[#allocation2 + $0x30] sm:$0xff]
    %v33 = vld [vmem:[#allocation2 + $0x38] sm:$0xff]
    %v34 = vld [vmem:[#allocation2 + $0x40] sm:$0xff]
    %v35 = vld [vmem:[#allocation2 + $0x48] sm:$0xff]
    %v36 = vld [vmem:[#allocation2 + $0x50] sm:$0xff]
    %v37 = vld [vmem:[#allocation2 + $0x58] sm:$0xff]
    %v38 = vld [vmem:[#allocation2 + $0x60] sm:$0xff]
    %v39 = vld [vmem:[#allocation2 + $0x68] sm:$0xff]
    %v40 = vld [vmem:[#allocation2 + $0x70] sm:$0xff]
    %v41 = vld [vmem:[#allocation2 + $0x78] sm:$0xff]
    %v42 = vld [vmem:[#allocation2 + $0x80] sm:$0xff]
    %v43 = vld [vmem:[#allocation2 + $0x88] sm:$0xff]
    %v44 = vld [vmem:[#allocation2 + $0x90] sm:$0xff]
    %v45 = vld [vmem:[#allocation2 + $0x98] sm:$0xff]
    %v46 = vld [vmem:[#allocation2 + $0xa0] sm:$0xff]
    %v47 = vld [vmem:[#allocation2 + $0xa8] sm:$0xff]
    %v48 = vld [vmem:[#allocation2 + $0xb0] sm:$0xff]
    %v49 = vld [vmem:[#allocation2 + $0xb8] sm:$0xff]
    %v50 = vld [vmem:[#allocation2 + $0xc0] sm:$0xff]
    %v51 = vld [vmem:[#allocation2 + $0xc8] sm:$0xff]
    %v52 = vld [vmem:[#allocation2 + $0xd0] sm:$0xff]
    %v53 = vld [vmem:[#allocation2 + $0xd8] sm:$0xff]
    %v54 = vld [vmem:[#allocation2 + $0xe0] sm:$0xff]
    %v55 = vld [vmem:[#allocation2 + $0xe8] sm:$0xff]
    %v56 = vld [vmem:[#allocation2 + $0xf0] sm:$0xff]
    %v57 = vld [vmem:[#allocation2 + $0xf8] sm:$0xff]
    %v58 = vld [vmem:[#allocation2 + $0x100] sm:$0xff]
    %v59 = vld [vmem:[#allocation2 + $0x108] sm:$0xff]
    %v60 = vld [vmem:[#allocation2 + $0x110] sm:$0xff]
    %v61 = vld [vmem:[#allocation2 + $0x118] sm:$0xff]
    %v62 = vld [vmem:[#allocation2 + $0x120] sm:$0xff]
    %v63 = vld [vmem:[#allocation2 + $0x128] sm:$0xff]
    %v64 = vld [vmem:[#allocation2 + $0x130] sm:$0xff]
    %v65 = vld [vmem:[#allocation2 + $0x138] sm:$0xff]
    %v66 = vld [vmem:[#allocation2 + $0x140] sm:$0xff]
    %v67 = vld [vmem:[#allocation2 + $0x148] sm:$0xff]
    %v68 = vld [vmem:[#allocation2 + $0x150] sm:$0xff]
    %v69 = vld [vmem:[#allocation2 + $0x158] sm:$0xff]
    %v70 = vld [vmem:[#allocation2 + $0x160] sm:$0xff]
    %v71 = vld [vmem:[#allocation2 + $0x168] sm:$0xff]
    %v72 = vld [vmem:[#allocation2 + $0x170] sm:$0xff]
    %v73 = vld [vmem:[#allocation2 + $0x178] sm:$0xff]
    %v74 = vld [vmem:[#allocation2 + $0x180] sm:$0xff]
    %v75 = vld [vmem:[#allocation2 + $0x188] sm:$0xff]
    %v76 = vld [vmem:[#allocation2 + $0x190] sm:$0xff]
    %v77 = vld [vmem:[#allocation2 + $0x198] sm:$0xff]
    %v78 = vld [vmem:[#allocation2 + $0x1a0] sm:$0xff]
    %v79 = vld [vmem:[#allocation2 + $0x1a8] sm:$0xff]
    %v80 = vld [vmem:[#allocation2 + $0x1b0] sm:$0xff]
    %v81 = vld [vmem:[#allocation2 + $0x1b8] sm:$0xff]
    %v82 = vld [vmem:[#allocation2 + $0x1c0] sm:$0xff]
    %v83 = vld [vmem:[#allocation2 + $0x1c8] sm:$0xff]
    %v84 = vld [vmem:[#allocation2 + $0x1d0] sm:$0xff]
    %v85 = vld [vmem:[#allocation2 + $0x1d8] sm:$0xff]
    %v86 = vld [vmem:[#allocation2 + $0x1e0] sm:$0xff]
    %v87 = vld [vmem:[#allocation2 + $0x1e8] sm:$0xff]
    %v88 = vld [vmem:[#allocation2 + $0x1f0] sm:$0xff]
    %v89 = vld [vmem:[#allocation2 + $0x1f8] sm:$0xff]
    %v90 = vld [vmem:[%s1] sm:$0xff]
    %v91 = vld [vmem:[%s1 + $0x8] sm:$0xff]
    %v92 = vld [vmem:[%s1 + $0x10] sm:$0xff]
    %v93 = vld [vmem:[%s1 + $0x18] sm:$0xff]
    %v94 = vld [vmem:[%s1 + $0x20] sm:$0xff]
    %v95 = vld [vmem:[%s1 + $0x28] sm:$0xff]
    %v96 = vld [vmem:[%s1 + $0x30] sm:$0xff]
    %v97 = vld [vmem:[%s1 + $0x38] sm:$0xff]
    %v98 = vld [vmem:[%s1 + $0x40] sm:$0xff]
    %v99 = vld [vmem:[%s1 + $0x48] sm:$0xff]
    %v100 = vld [vmem:[%s1 + $0x50] sm:$0xff]
    %v101 = vld [vmem:[%s1 + $0x58] sm:$0xff]
    %v102 = vld [vmem:[%s1 + $0x60] sm:$0xff]
    %v103 = vld [vmem:[%s1 + $0x68] sm:$0xff]
    %v104 = vld [vmem:[%s1 + $0x70] sm:$0xff]
    %v105 = vld [vmem:[%s1 + $0x78] sm:$0xff]
    %v106 = vld [vmem:[%s1 + $0x80] sm:$0xff]
    %v107 = vld [vmem:[%s1 + $0x88] sm:$0xff]
    %v108 = vld [vmem:[%s1 + $0x90] sm:$0xff]
    %v109 = vld [vmem:[%s1 + $0x98] sm:$0xff]
    %v110 = vld [vmem:[%s1 + $0xa0] sm:$0xff]
    %v111 = vld [vmem:[%s1 + $0xa8] sm:$0xff]
    %v112 = vld [vmem:[%s1 + $0xb0] sm:$0xff]
    %v113 = vld [vmem:[%s1 + $0xb8] sm:$0xff]
    %v114 = vld [vmem:[%s1 + $0xc0] sm:$0xff]
    %v115 = vld [vmem:[%s1 + $0xc8] sm:$0xff]
    %v116 = vld [vmem:[%s1 + $0xd0] sm:$0xff]
    %v117 = vld [vmem:[%s1 + $0xd8] sm:$0xff]
    %v118 = vld [vmem:[%s1 + $0xe0] sm:$0xff]
    %v119 = vld [vmem:[%s1 + $0xe8] sm:$0xff]
    %v120 = vld [vmem:[%s1 + $0xf0] sm:$0xff]
    %v121 = vld [vmem:[%s1 + $0xf8] sm:$0xff]
    %v122 = vld [vmem:[%s1 + $0x100] sm:$0xff]
    %v123 = vld [vmem:[%s1 + $0x108] sm:$0xff]
    %v124 = vld [vmem:[%s1 + $0x110] sm:$0xff]
    %v125 = vld [vmem:[%s1 + $0x118] sm:$0xff]
    %v126 = vld [vmem:[%s1 + $0x120] sm:$0xff]
    %v127 = vld [vmem:[%s1 + $0x128] sm:$0xff]
    %v128 = vld [vmem:[%s1 + $0x130] sm:$0xff]
    %v129 = vld [vmem:[%s1 + $0x138] sm:$0xff]
    %v130 = vld [vmem:[%s1 + $0x140] sm:$0xff]
    %v131 = vld [vmem:[%s1 + $0x148] sm:$0xff]
    %v132 = vld [vmem:[%s1 + $0x150] sm:$0xff]
    %v133 = vld [vmem:[%s1 + $0x158] sm:$0xff]
    %v134 = vld [vmem:[%s1 + $0x160] sm:$0xff]
    %v135 = vld [vmem:[%s1 + $0x168] sm:$0xff]
    %v136 = vld [vmem:[%s1 + $0x170] sm:$0xff]
    %v137 = vld [vmem:[%s1 + $0x178] sm:$0xff]
    %v138 = vld [vmem:[%s1 + $0x180] sm:$0xff]
    %v139 = vld [vmem:[%s1 + $0x188] sm:$0xff]
    %v140 = vld [vmem:[%s1 + $0x190] sm:$0xff]
    %v141 = vld [vmem:[%s1 + $0x198] sm:$0xff]
    %v142 = vld [vmem:[%s1 + $0x1a0] sm:$0xff]
    %v143 = vld [vmem:[%s1 + $0x1a8] sm:$0xff]
    %v144 = vld [vmem:[%s1 + $0x1b0] sm:$0xff]
    %v145 = vld [vmem:[%s1 + $0x1b8] sm:$0xff]
    %v146 = vld [vmem:[%s1 + $0x1c0] sm:$0xff]
    %v147 = vld [vmem:[%s1 + $0x1c8] sm:$0xff]
    %v148 = vld [vmem:[%s1 + $0x1d0] sm:$0xff]
    %v149 = vld [vmem:[%s1 + $0x1d8] sm:$0xff]
    %v150 = vld [vmem:[%s1 + $0x1e0] sm:$0xff]
    %v151 = vld [vmem:[%s1 + $0x1e8] sm:$0xff]
    %v152 = vld [vmem:[%s1 + $0x1f0] sm:$0xff]
    %v153 = vld [vmem:[%s1 + $0x1f8] sm:$0xff]
    %v154 = vadd.f32 %v26, %v90
    %v155 = vadd.f32 %v27, %v91
    %v156 = vadd.f32 %v28, %v92
    %v157 = vadd.f32 %v29, %v93
    %v158 = vadd.f32 %v30, %v94
    %v159 = vadd.f32 %v31, %v95
    %v160 = vadd.f32 %v32, %v96
    %v161 = vadd.f32 %v33, %v97
    %v162 = vadd.f32 %v34, %v98
    %v163 = vadd.f32 %v35, %v99
    %v164 = vadd.f32 %v36, %v100
    %v165 = vadd.f32 %v37, %v101
    %v166 = vadd.f32 %v38, %v102
    %v167 = vadd.f32 %v39, %v103
    %v168 = vadd.f32 %v40, %v104
    %v169 = vadd.f32 %v41, %v105
    %v170 = vadd.f32 %v42, %v106
    %v171 = vadd.f32 %v43, %v107
    %v172 = vadd.f32 %v44, %v108
    %v173 = vadd.f32 %v45, %v109
    %v174 = vadd.f32 %v46, %v110
    %v175 = vadd.f32 %v47, %v111
    %v176 = vadd.f32 %v48, %v112
    %v177 = vadd.f32 %v49, %v113
    %v178 = vadd.f32 %v50, %v114
    %v179 = vadd.f32 %v51, %v115
    %v180 = vadd.f32 %v52, %v116
    %v181 = vadd.f32 %v53, %v117
    %v182 = vadd.f32 %v54, %v118
    %v183 = vadd.f32 %v55, %v119
    %v184 = vadd.f32 %v56, %v120
    %v185 = vadd.f32 %v57, %v121
    %v186 = vadd.f32 %v58, %v122
    %v187 = vadd.f32 %v59, %v123
    %v188 = vadd.f32 %v60, %v124
    %v189 = vadd.f32 %v61, %v125
    %v190 = vadd.f32 %v62, %v126
    %v191 = vadd.f32 %v63, %v127
    %v192 = vadd.f32 %v64, %v128
    %v193 = vadd.f32 %v65, %v129
    %v194 = vadd.f32 %v66, %v130
    %v195 = vadd.f32 %v67, %v131
    %v196 = vadd.f32 %v68, %v132
    %v197 = vadd.f32 %v69, %v133
    %v198 = vadd.f32 %v70, %v134
    %v199 = vadd.f32 %v71, %v135
    %v200 = vadd.f32 %v72, %v136
    %v201 = vadd.f32 %v73, %v137
    %v202 = vadd.f32 %v74, %v138
    %v203 = vadd.f32 %v75, %v139
    %v204 = vadd.f32 %v76, %v140
    %v205 = vadd.f32 %v77, %v141
    %v206 = vadd.f32 %v78, %v142
    %v207 = vadd.f32 %v79, %v143
    %v208 = vadd.f32 %v80, %v144
    %v209 = vadd.f32 %v81, %v145
    %v210 = vadd.f32 %v82, %v146
    %v211 = vadd.f32 %v83, %v147
    %v212 = vadd.f32 %v84, %v148
    %v213 = vadd.f32 %v85, %v149
    %v214 = vadd.f32 %v86, %v150
    %v215 = vadd.f32 %v87, %v151
    %v216 = vadd.f32 %v88, %v152
    %v217 = vadd.f32 %v89, %v153
    %218 = vst [vmem:[#allocation5] sm:$0xff] %v154
    %219 = vst [vmem:[#allocation5 + $0x8] sm:$0xff] %v155
    %220 = vst [vmem:[#allocation5 + $0x10] sm:$0xff] %v156
    %221 = vst [vmem:[#allocation5 + $0x18] sm:$0xff] %v157
    %222 = vst [vmem:[#allocation5 + $0x20] sm:$0xff] %v158
    %223 = vst [vmem:[#allocation5 + $0x28] sm:$0xff] %v159
    %224 = vst [vmem:[#allocation5 + $0x30] sm:$0xff] %v160
    %225 = vst [vmem:[#allocation5 + $0x38] sm:$0xff] %v161
    %226 = vst [vmem:[#allocation5 + $0x40] sm:$0xff] %v162
    %227 = vst [vmem:[#allocation5 + $0x48] sm:$0xff] %v163
    %228 = vst [vmem:[#allocation5 + $0x50] sm:$0xff] %v164
    %229 = vst [vmem:[#allocation5 + $0x58] sm:$0xff] %v165
    %230 = vst [vmem:[#allocation5 + $0x60] sm:$0xff] %v166
    %231 = vst [vmem:[#allocation5 + $0x68] sm:$0xff] %v167
    %232 = vst [vmem:[#allocation5 + $0x70] sm:$0xff] %v168
    %233 = vst [vmem:[#allocation5 + $0x78] sm:$0xff] %v169
    %234 = vst [vmem:[#allocation5 + $0x80] sm:$0xff] %v170
    %235 = vst [vmem:[#allocation5 + $0x88] sm:$0xff] %v171
    %236 = vst [vmem:[#allocation5 + $0x90] sm:$0xff] %v172
    %237 = vst [vmem:[#allocation5 + $0x98] sm:$0xff] %v173
    %238 = vst [vmem:[#allocation5 + $0xa0] sm:$0xff] %v174
    %239 = vst [vmem:[#allocation5 + $0xa8] sm:$0xff] %v175
    %240 = vst [vmem:[#allocation5 + $0xb0] sm:$0xff] %v176
    %241 = vst [vmem:[#allocation5 + $0xb8] sm:$0xff] %v177
    %242 = vst [vmem:[#allocation5 + $0xc0] sm:$0xff] %v178
    %243 = vst [vmem:[#allocation5 + $0xc8] sm:$0xff] %v179
    %244 = vst [vmem:[#allocation5 + $0xd0] sm:$0xff] %v180
    %245 = vst [vmem:[#allocation5 + $0xd8] sm:$0xff] %v181
    %246 = vst [vmem:[#allocation5 + $0xe0] sm:$0xff] %v182
    %247 = vst [vmem:[#allocation5 + $0xe8] sm:$0xff] %v183
    %248 = vst [vmem:[#allocation5 + $0xf0] sm:$0xff] %v184
    %249 = vst [vmem:[#allocation5 + $0xf8] sm:$0xff] %v185
    %250 = vst [vmem:[#allocation5 + $0x100] sm:$0xff] %v186
    %251 = vst [vmem:[#allocation5 + $0x108] sm:$0xff] %v187
    %252 = vst [vmem:[#allocation5 + $0x110] sm:$0xff] %v188
    %253 = vst [vmem:[#allocation5 + $0x118] sm:$0xff] %v189
    %254 = vst [vmem:[#allocation5 + $0x120] sm:$0xff] %v190
    %255 = vst [vmem:[#allocation5 + $0x128] sm:$0xff] %v191
    %256 = vst [vmem:[#allocation5 + $0x130] sm:$0xff] %v192
    %257 = vst [vmem:[#allocation5 + $0x138] sm:$0xff] %v193
    %258 = vst [vmem:[#allocation5 + $0x140] sm:$0xff] %v194
    %259 = vst [vmem:[#allocation5 + $0x148] sm:$0xff] %v195
    %260 = vst [vmem:[#allocation5 + $0x150] sm:$0xff] %v196
    %261 = vst [vmem:[#allocation5 + $0x158] sm:$0xff] %v197
    %262 = vst [vmem:[#allocation5 + $0x160] sm:$0xff] %v198
    %263 = vst [vmem:[#allocation5 + $0x168] sm:$0xff] %v199
    %264 = vst [vmem:[#allocation5 + $0x170] sm:$0xff] %v200
    %265 = vst [vmem:[#allocation5 + $0x178] sm:$0xff] %v201
    %266 = vst [vmem:[#allocation5 + $0x180] sm:$0xff] %v202
    %267 = vst [vmem:[#allocation5 + $0x188] sm:$0xff] %v203
    %268 = vst [vmem:[#allocation5 + $0x190] sm:$0xff] %v204
    %269 = vst [vmem:[#allocation5 + $0x198] sm:$0xff] %v205
    %270 = vst [vmem:[#allocation5 + $0x1a0] sm:$0xff] %v206
    %271 = vst [vmem:[#allocation5 + $0x1a8] sm:$0xff] %v207
    %272 = vst [vmem:[#allocation5 + $0x1b0] sm:$0xff] %v208
    %273 = vst [vmem:[#allocation5 + $0x1b8] sm:$0xff] %v209
    %274 = vst [vmem:[#allocation5 + $0x1c0] sm:$0xff] %v210
    %275 = vst [vmem:[#allocation5 + $0x1c8] sm:$0xff] %v211
    %276 = vst [vmem:[#allocation5 + $0x1d0] sm:$0xff] %v212
    %277 = vst [vmem:[#allocation5 + $0x1d8] sm:$0xff] %v213
    %278 = vst [vmem:[#allocation5 + $0x1e0] sm:$0xff] %v214
    %279 = vst [vmem:[#allocation5 + $0x1e8] sm:$0xff] %v215
    %280 = vst [vmem:[#allocation5 + $0x1f0] sm:$0xff] %v216
    %281 = vst [vmem:[#allocation5 + $0x1f8] sm:$0xff] %v217
    // Predicated region
    $region14: #{branch_0_fun.1} parent=1 // pred_check
      _
    $region15: #{branch_0_fun.1} parent=1 // pred_check_branch
      %283 = sbr.rel (0) target = $region17
    $region16: #{branch_0_fun.1} parent=1 // pred_region
      %s285 = ssub.s32 8192, 8192
      %286 = vsyncadd [#allocation4], %s285
      %s287 = sshll.u32 [#allocation5], 4
      %s288 = int_to_ptr.vmem [resolvable:$true] %s287
      %293 = dma.vmem_to_hbm [thread:$0]  %s288, 8192, %s2, [#allocation4], 256, 256, 16
    $region17: #{branch_0_fun.1} parent=1 // pred_fallthru
      _
    // Predicated region
    $region18: #{branch_0_fun.1} parent=1 // pred_check
      _
    $region19: #{branch_0_fun.1} parent=1 // pred_check_branch
      %295 = sbr.rel (0) target = $region21
    $region20: #{branch_0_fun.1} parent=1 // pred_region
      %296 = dma.done [#allocation4], 8192
    $region21: #{branch_0_fun.1} parent=1 // pred_fallthru
      _
    %297 = vsyncpa [#allocation3], 1
    %298 = vsyncpa [#allocation4], 1

// kernel: branch_1_fun.1
$region0: #{branch_1_fun.1}
  #allocation0 [shape = 'u32[]', space=smem, size = 0x4, offset = 0x4, fixed_abs, tag = 'smem constant byte address 0x4 - core index']
  #allocation1 [shape = 'u32[144,128]{1,0:T(1,128)}', space=vmem, size = 0x12000, scoped, tag = 'internal scratch']
  %s0 = inlined_call_operand.hbm [shape: f32[256,256], index: 0, kind: input, shape index: {}]
  %s1 = inlined_call_operand.vmem [shape: f32[256,256], index: 1, kind: input, shape index: {}]
  %s2 = inlined_call_operand.hbm [shape: f32[256,256], index: 2, kind: output, shape index: {}]
  %s3 = sld [smem:[#allocation0]]
  $region22: #{branch_1_fun.1} parent=0
    _
  %s5 = ssub.s32 1, %s3
  %s6 = scalar_select 0, %s5, %s3
  $region1: #{branch_1_fun.1} parent=0
    #allocation2 [shape = 'u8[262144]{0}', space=vmem, size = 0x40000, scoped, tag = 'input window, operand 0, single buffered']
    #allocation3 [shape = 's32[1]{0}', space=sflag, size = 0x4, scoped, tag = 'scoped memory for branch_1_fun.1']
    #allocation4 [shape = 's32[1]{0}', space=sflag, size = 0x4, scoped, tag = 'scoped memory for branch_1_fun.1']
    #allocation5 [shape = 'u8[262144]{0}', space=vmem, size = 0x40000, scoped, tag = 'output window, operand 0, single buffered']
    %7 = vsyncpa [#allocation3], 0
    %8 = vsyncpa [#allocation4], 0
    // Predicated region
    $region2: #{branch_1_fun.1} parent=1 // pred_check
      _
    $region3: #{branch_1_fun.1} parent=1 // pred_check_branch
      %10 = sbr.rel (0) target = $region5
    $region4: #{branch_1_fun.1} parent=1 // pred_region
      %s12 = ssub.s32 8192, 8192
      %13 = vsyncadd [#allocation3], %s12
      %s14 = sshll.u32 [#allocation2], 4
      %s15 = int_to_ptr.vmem [resolvable:$true] %s14
      %20 = dma.hbm_to_vmem [thread:$0]  %s0, 8192, %s15, [#allocation3], 256, 256, 16
    $region5: #{branch_1_fun.1} parent=1 // pred_fallthru
      _
    // Predicated region
    $region6: #{branch_1_fun.1} parent=1 // pred_check
      _
    $region7: #{branch_1_fun.1} parent=1 // pred_check_branch
      %22 = sbr.rel (0) target = $region9
    $region8: #{branch_1_fun.1} parent=1 // pred_region
      _
    $region9: #{branch_1_fun.1} parent=1 // pred_fallthru
      _
    // Predicated region
    $region10: #{branch_1_fun.1} parent=1 // pred_check
      _
    $region11: #{branch_1_fun.1} parent=1 // pred_check_branch
      %24 = sbr.rel (0) target = $region13
    $region12: #{branch_1_fun.1} parent=1 // pred_region
      %25 = dma.done [#allocation3], 8192
    $region13: #{branch_1_fun.1} parent=1 // pred_fallthru
      _
    %v26 = vld [vmem:[#allocation2] sm:$0xff]
    %v27 = vld [vmem:[#allocation2 + $0x8] sm:$0xff]
    %v28 = vld [vmem:[#allocation2 + $0x10] sm:$0xff]
    %v29 = vld [vmem:[#allocation2 + $0x18] sm:$0xff]
    %v30 = vld [vmem:[#allocation2 + $0x20] sm:$0xff]
    %v31 = vld [vmem:[#allocation2 + $0x28] sm:$0xff]
    %v32 = vld [vmem:[#allocation2 + $0x30] sm:$0xff]
    %v33 = vld [vmem:[#allocation2 + $0x38] sm:$0xff]
    %v34 = vld [vmem:[#allocation2 + $0x40] sm:$0xff]
    %v35 = vld [vmem:[#allocation2 + $0x48] sm:$0xff]
    %v36 = vld [vmem:[#allocation2 + $0x50] sm:$0xff]
    %v37 = vld [vmem:[#allocation2 + $0x58] sm:$0xff]
    %v38 = vld [vmem:[#allocation2 + $0x60] sm:$0xff]
    %v39 = vld [vmem:[#allocation2 + $0x68] sm:$0xff]
    %v40 = vld [vmem:[#allocation2 + $0x70] sm:$0xff]
    %v41 = vld [vmem:[#allocation2 + $0x78] sm:$0xff]
    %v42 = vld [vmem:[#allocation2 + $0x80] sm:$0xff]
    %v43 = vld [vmem:[#allocation2 + $0x88] sm:$0xff]
    %v44 = vld [vmem:[#allocation2 + $0x90] sm:$0xff]
    %v45 = vld [vmem:[#allocation2 + $0x98] sm:$0xff]
    %v46 = vld [vmem:[#allocation2 + $0xa0] sm:$0xff]
    %v47 = vld [vmem:[#allocation2 + $0xa8] sm:$0xff]
    %v48 = vld [vmem:[#allocation2 + $0xb0] sm:$0xff]
    %v49 = vld [vmem:[#allocation2 + $0xb8] sm:$0xff]
    %v50 = vld [vmem:[#allocation2 + $0xc0] sm:$0xff]
    %v51 = vld [vmem:[#allocation2 + $0xc8] sm:$0xff]
    %v52 = vld [vmem:[#allocation2 + $0xd0] sm:$0xff]
    %v53 = vld [vmem:[#allocation2 + $0xd8] sm:$0xff]
    %v54 = vld [vmem:[#allocation2 + $0xe0] sm:$0xff]
    %v55 = vld [vmem:[#allocation2 + $0xe8] sm:$0xff]
    %v56 = vld [vmem:[#allocation2 + $0xf0] sm:$0xff]
    %v57 = vld [vmem:[#allocation2 + $0xf8] sm:$0xff]
    %v58 = vld [vmem:[#allocation2 + $0x100] sm:$0xff]
    %v59 = vld [vmem:[#allocation2 + $0x108] sm:$0xff]
    %v60 = vld [vmem:[#allocation2 + $0x110] sm:$0xff]
    %v61 = vld [vmem:[#allocation2 + $0x118] sm:$0xff]
    %v62 = vld [vmem:[#allocation2 + $0x120] sm:$0xff]
    %v63 = vld [vmem:[#allocation2 + $0x128] sm:$0xff]
    %v64 = vld [vmem:[#allocation2 + $0x130] sm:$0xff]
    %v65 = vld [vmem:[#allocation2 + $0x138] sm:$0xff]
    %v66 = vld [vmem:[#allocation2 + $0x140] sm:$0xff]
    %v67 = vld [vmem:[#allocation2 + $0x148] sm:$0xff]
    %v68 = vld [vmem:[#allocation2 + $0x150] sm:$0xff]
    %v69 = vld [vmem:[#allocation2 + $0x158] sm:$0xff]
    %v70 = vld [vmem:[#allocation2 + $0x160] sm:$0xff]
    %v71 = vld [vmem:[#allocation2 + $0x168] sm:$0xff]
    %v72 = vld [vmem:[#allocation2 + $0x170] sm:$0xff]
    %v73 = vld [vmem:[#allocation2 + $0x178] sm:$0xff]
    %v74 = vld [vmem:[#allocation2 + $0x180] sm:$0xff]
    %v75 = vld [vmem:[#allocation2 + $0x188] sm:$0xff]
    %v76 = vld [vmem:[#allocation2 + $0x190] sm:$0xff]
    %v77 = vld [vmem:[#allocation2 + $0x198] sm:$0xff]
    %v78 = vld [vmem:[#allocation2 + $0x1a0] sm:$0xff]
    %v79 = vld [vmem:[#allocation2 + $0x1a8] sm:$0xff]
    %v80 = vld [vmem:[#allocation2 + $0x1b0] sm:$0xff]
    %v81 = vld [vmem:[#allocation2 + $0x1b8] sm:$0xff]
    %v82 = vld [vmem:[#allocation2 + $0x1c0] sm:$0xff]
    %v83 = vld [vmem:[#allocation2 + $0x1c8] sm:$0xff]
    %v84 = vld [vmem:[#allocation2 + $0x1d0] sm:$0xff]
    %v85 = vld [vmem:[#allocation2 + $0x1d8] sm:$0xff]
    %v86 = vld [vmem:[#allocation2 + $0x1e0] sm:$0xff]
    %v87 = vld [vmem:[#allocation2 + $0x1e8] sm:$0xff]
    %v88 = vld [vmem:[#allocation2 + $0x1f0] sm:$0xff]
    %v89 = vld [vmem:[#allocation2 + $0x1f8] sm:$0xff]
    %v90 = vld [vmem:[%s1] sm:$0xff]
    %v91 = vld [vmem:[%s1 + $0x8] sm:$0xff]
    %v92 = vld [vmem:[%s1 + $0x10] sm:$0xff]
    %v93 = vld [vmem:[%s1 + $0x18] sm:$0xff]
    %v94 = vld [vmem:[%s1 + $0x20] sm:$0xff]
    %v95 = vld [vmem:[%s1 + $0x28] sm:$0xff]
    %v96 = vld [vmem:[%s1 + $0x30] sm:$0xff]
    %v97 = vld [vmem:[%s1 + $0x38] sm:$0xff]
    %v98 = vld [vmem:[%s1 + $0x40] sm:$0xff]
    %v99 = vld [vmem:[%s1 + $0x48] sm:$0xff]
    %v100 = vld [vmem:[%s1 + $0x50] sm:$0xff]
    %v101 = vld [vmem:[%s1 + $0x58] sm:$0xff]
    %v102 = vld [vmem:[%s1 + $0x60] sm:$0xff]
    %v103 = vld [vmem:[%s1 + $0x68] sm:$0xff]
    %v104 = vld [vmem:[%s1 + $0x70] sm:$0xff]
    %v105 = vld [vmem:[%s1 + $0x78] sm:$0xff]
    %v106 = vld [vmem:[%s1 + $0x80] sm:$0xff]
    %v107 = vld [vmem:[%s1 + $0x88] sm:$0xff]
    %v108 = vld [vmem:[%s1 + $0x90] sm:$0xff]
    %v109 = vld [vmem:[%s1 + $0x98] sm:$0xff]
    %v110 = vld [vmem:[%s1 + $0xa0] sm:$0xff]
    %v111 = vld [vmem:[%s1 + $0xa8] sm:$0xff]
    %v112 = vld [vmem:[%s1 + $0xb0] sm:$0xff]
    %v113 = vld [vmem:[%s1 + $0xb8] sm:$0xff]
    %v114 = vld [vmem:[%s1 + $0xc0] sm:$0xff]
    %v115 = vld [vmem:[%s1 + $0xc8] sm:$0xff]
    %v116 = vld [vmem:[%s1 + $0xd0] sm:$0xff]
    %v117 = vld [vmem:[%s1 + $0xd8] sm:$0xff]
    %v118 = vld [vmem:[%s1 + $0xe0] sm:$0xff]
    %v119 = vld [vmem:[%s1 + $0xe8] sm:$0xff]
    %v120 = vld [vmem:[%s1 + $0xf0] sm:$0xff]
    %v121 = vld [vmem:[%s1 + $0xf8] sm:$0xff]
    %v122 = vld [vmem:[%s1 + $0x100] sm:$0xff]
    %v123 = vld [vmem:[%s1 + $0x108] sm:$0xff]
    %v124 = vld [vmem:[%s1 + $0x110] sm:$0xff]
    %v125 = vld [vmem:[%s1 + $0x118] sm:$0xff]
    %v126 = vld [vmem:[%s1 + $0x120] sm:$0xff]
    %v127 = vld [vmem:[%s1 + $0x128] sm:$0xff]
    %v128 = vld [vmem:[%s1 + $0x130] sm:$0xff]
    %v129 = vld [vmem:[%s1 + $0x138] sm:$0xff]
    %v130 = vld [vmem:[%s1 + $0x140] sm:$0xff]
    %v131 = vld [vmem:[%s1 + $0x148] sm:$0xff]
    %v132 = vld [vmem:[%s1 + $0x150] sm:$0xff]
    %v133 = vld [vmem:[%s1 + $0x158] sm:$0xff]
    %v134 = vld [vmem:[%s1 + $0x160] sm:$0xff]
    %v135 = vld [vmem:[%s1 + $0x168] sm:$0xff]
    %v136 = vld [vmem:[%s1 + $0x170] sm:$0xff]
    %v137 = vld [vmem:[%s1 + $0x178] sm:$0xff]
    %v138 = vld [vmem:[%s1 + $0x180] sm:$0xff]
    %v139 = vld [vmem:[%s1 + $0x188] sm:$0xff]
    %v140 = vld [vmem:[%s1 + $0x190] sm:$0xff]
    %v141 = vld [vmem:[%s1 + $0x198] sm:$0xff]
    %v142 = vld [vmem:[%s1 + $0x1a0] sm:$0xff]
    %v143 = vld [vmem:[%s1 + $0x1a8] sm:$0xff]
    %v144 = vld [vmem:[%s1 + $0x1b0] sm:$0xff]
    %v145 = vld [vmem:[%s1 + $0x1b8] sm:$0xff]
    %v146 = vld [vmem:[%s1 + $0x1c0] sm:$0xff]
    %v147 = vld [vmem:[%s1 + $0x1c8] sm:$0xff]
    %v148 = vld [vmem:[%s1 + $0x1d0] sm:$0xff]
    %v149 = vld [vmem:[%s1 + $0x1d8] sm:$0xff]
    %v150 = vld [vmem:[%s1 + $0x1e0] sm:$0xff]
    %v151 = vld [vmem:[%s1 + $0x1e8] sm:$0xff]
    %v152 = vld [vmem:[%s1 + $0x1f0] sm:$0xff]
    %v153 = vld [vmem:[%s1 + $0x1f8] sm:$0xff]
    %154 = vmatprep.subr.mxu0 %v91
    %155 = vmatpush1.msra.mxu0 %v90
    %156 = vmatprep.subr.mxu0 %v93
    %157 = vmatpush1.msra.mxu0 %v92
    %158 = vmatprep.subr.mxu0 %v95
    %159 = vmatpush1.msra.mxu0 %v94
    %160 = vmatprep.subr.mxu0 %v97
    %161 = vmatpush1.msra.mxu0 %v96
    %162 = vmatprep.subr.mxu0 %v99
    %163 = vmatpush1.msra.mxu0 %v98
    %164 = vmatprep.subr.mxu0 %v101
    %165 = vmatpush1.msra.mxu0 %v100
    %166 = vmatprep.subr.mxu0 %v103
    %167 = vmatpush1.msra.mxu0 %v102
    %168 = vmatprep.subr.mxu0 %v105
    %169 = vmatpush1.msra.mxu0 %v104
    %170 = vmatprep.subr.mxu0 %v107
    %171 = vmatpush1.msra.mxu0 %v106
    %172 = vmatprep.subr.mxu0 %v109
    %173 = vmatpush1.msra.mxu0 %v108
    %174 = vmatprep.subr.mxu0 %v111
    %175 = vmatpush1.msra.mxu0 %v110
    %176 = vmatprep.subr.mxu0 %v113
    %177 = vmatpush1.msra.mxu0 %v112
    %178 = vmatprep.subr.mxu0 %v115
    %179 = vmatpush1.msra.mxu0 %v114
    %180 = vmatprep.subr.mxu0 %v117
    %181 = vmatpush1.msra.mxu0 %v116
    %182 = vmatprep.subr.mxu0 %v119
    %183 = vmatpush1.msra.mxu0 %v118
    %184 = vmatprep.subr.mxu0 %v121
    %185 = vmatpush1.msra.mxu0 %v120
    %186 = vmatprep.subr.mxu0 %v123
    %187 = vmatpush1.msra.mxu0 %v122
    %188 = vmatprep.subr.mxu0 %v125
    %189 = vmatpush1.msra.mxu0 %v124
    %190 = vmatprep.subr.mxu0 %v127
    %191 = vmatpush1.msra.mxu0 %v126
    %192 = vmatprep.subr.mxu0 %v129
    %193 = vmatpush1.msra.mxu0 %v128
    %194 = vmatprep.subr.mxu0 %v131
    %195 = vmatpush1.msra.mxu0 %v130
    %196 = vmatprep.subr.mxu0 %v133
    %197 = vmatpush1.msra.mxu0 %v132
    %198 = vmatprep.subr.mxu0 %v135
    %199 = vmatpush1.msra.mxu0 %v134
    %200 = vmatprep.subr.mxu0 %v137
    %201 = vmatpush1.msra.mxu0 %v136
    %202 = vmatprep.subr.mxu0 %v139
    %203 = vmatpush1.msra.mxu0 %v138
    %204 = vmatprep.subr.mxu0 %v141
    %205 = vmatpush1.msra.mxu0 %v140
    %206 = vmatprep.subr.mxu0 %v143
    %207 = vmatpush1.msra.mxu0 %v142
    %208 = vmatprep.subr.mxu0 %v145
    %209 = vmatpush1.msra.mxu0 %v144
    %210 = vmatprep.subr.mxu0 %v147
    %211 = vmatpush1.msra.mxu0 %v146
    %212 = vmatprep.subr.mxu0 %v149
    %213 = vmatpush1.msra.mxu0 %v148
    %214 = vmatprep.subr.mxu0 %v151
    %215 = vmatpush1.msra.mxu0 %v150
    %216 = vmatprep.subr.mxu0 %v153
    %217 = vmatpush1.msra.mxu0 %v152
    %218 = vmatprep.mubr.f32.mxu0 %v27
    %219 = vmatmul.mubr.f32.gmra.mrb[0].mxu0 %v26
    %v220 = vpop.f32.mrb[0].mxu0
    %v221 = vadd.f32 0.0, %v220
    %v222 = vpop.f32.mrb[0].mxu0
    %v223 = vadd.f32 0.0, %v222
    %224 = vmatprep.mubr.f32.mxu0 %v29
    %225 = vmatmul.mubr.f32.gmra.mrb[0].mxu0 %v28
    %v226 = vpop.f32.mrb[0].mxu0
    %v227 = vadd.f32 0.0, %v226
    %v228 = vpop.f32.mrb[0].mxu0
    %v229 = vadd.f32 0.0, %v228
    %230 = vmatprep.mubr.f32.mxu0 %v31
    %231 = vmatmul.mubr.f32.gmra.mrb[0].mxu0 %v30
    %v232 = vpop.f32.mrb[0].mxu0
    %v233 = vadd.f32 0.0, %v232
    %v234 = vpop.f32.mrb[0].mxu0
    %v235 = vadd.f32 0.0, %v234
    %236 = vmatprep.mubr.f32.mxu0 %v33
    %237 = vmatmul.mubr.f32.gmra.mrb[0].mxu0 %v32
    %v238 = vpop.f32.mrb[0].mxu0
    %v239 = vadd.f32 0.0, %v238
    %v240 = vpop.f32.mrb[0].mxu0
    %v241 = vadd.f32 0.0, %v240
    %242 = vmatprep.mubr.f32.mxu0 %v35
    %243 = vmatmul.mubr.f32.gmra.mrb[0].mxu0 %v34
    %v244 = vpop.f32.mrb[0].mxu0
    %v245 = vadd.f32 0.0, %v244
    %v246 = vpop.f32.mrb[0].mxu0
    %v247 = vadd.f32 0.0, %v246
    %248 = vmatprep.mubr.f32.mxu0 %v37
    %249 = vmatmul.mubr.f32.gmra.mrb[0].mxu0 %v36
    %v250 = vpop.f32.mrb[0].mxu0
    %v251 = vadd.f32 0.0, %v250
    %v252 = vpop.f32.mrb[0].mxu0
    %v253 = vadd.f32 0.0, %v252
    %254 = vmatprep.mubr.f32.mxu0 %v39
    %255 = vmatmul.mubr.f32.gmra.mrb[0].mxu0 %v38
    %v256 = vpop.f32.mrb[0].mxu0
    %v257 = vadd.f32 0.0, %v256
    %v258 = vpop.f32.mrb[0].mxu0
    %v259 = vadd.f32 0.0, %v258
    %260 = vmatprep.mubr.f32.mxu0 %v41
    %261 = vmatmul.mubr.f32.gmra.mrb[0].mxu0 %v40
    %v262 = vpop.f32.mrb[0].mxu0
    %v263 = vadd.f32 0.0, %v262
    %v264 = vpop.f32.mrb[0].mxu0
    %v265 = vadd.f32 0.0, %v264
    %266 = vmatprep.mubr.f32.mxu0 %v43
    %267 = vmatmul.mubr.f32.gmra.mrb[0].mxu0 %v42
    %v268 = vpop.f32.mrb[0].mxu0
    %v269 = vadd.f32 0.0, %v268
    %v270 = vpop.f32.mrb[0].mxu0
    %v271 = vadd.f32 0.0, %v270
    %272 = vmatprep.mubr.f32.mxu0 %v45
    %273 = vmatmul.mubr.f32.gmra.mrb[0].mxu0 %v44
    %v274 = vpop.f32.mrb[0].mxu0
    %v275 = vadd.f32 0.0, %v274
    %v276 = vpop.f32.mrb[0].mxu0
    %v277 = vadd.f32 0.0, %v276
    %278 = vmatprep.mubr.f32.mxu0 %v47
    %279 = vmatmul.mubr.f32.gmra.mrb[0].mxu0 %v46
    %v280 = vpop.f32.mrb[0].mxu0
    %v281 = vadd.f32 0.0, %v280
    %v282 = vpop.f32.mrb[0].mxu0
    %v283 = vadd.f32 0.0, %v282
    %284 = vmatprep.mubr.f32.mxu0 %v49
    %285 = vmatmul.mubr.f32.gmra.mrb[0].mxu0 %v48
    %v286 = vpop.f32.mrb[0].mxu0
    %v287 = vadd.f32 0.0, %v286
    %v288 = vpop.f32.mrb[0].mxu0
    %v289 = vadd.f32 0.0, %v288
    %290 = vmatprep.mubr.f32.mxu0 %v51
    %291 = vmatmul.mubr.f32.gmra.mrb[0].mxu0 %v50
    %v292 = vpop.f32.mrb[0].mxu0
    %v293 = vadd.f32 0.0, %v292
    %v294 = vpop.f32.mrb[0].mxu0
    %v295 = vadd.f32 0.0, %v294
    %296 = vmatprep.mubr.f32.mxu0 %v53
    %297 = vmatmul.mubr.f32.gmra.mrb[0].mxu0 %v52
    %v298 = vpop.f32.mrb[0].mxu0
    %v299 = vadd.f32 0.0, %v298
    %v300 = vpop.f32.mrb[0].mxu0
    %v301 = vadd.f32 0.0, %v300
    %302 = vmatprep.mubr.f32.mxu0 %v55
    %303 = vmatmul.mubr.f32.gmra.mrb[0].mxu0 %v54
    %v304 = vpop.f32.mrb[0].mxu0
    %v305 = vadd.f32 0.0, %v304
    %v306 = vpop.f32.mrb[0].mxu0
    %v307 = vadd.f32 0.0, %v306
    %308 = vmatprep.mubr.f32.mxu0 %v57
    %309 = vmatmul.mubr.f32.gmra.mrb[0].mxu0 %v56
    %v310 = vpop.f32.mrb[0].mxu0
    %v311 = vadd.f32 0.0, %v310
    %v312 = vpop.f32.mrb[0].mxu0
    %v313 = vadd.f32 0.0, %v312
    %314 = vmatprep.mubr.f32.mxu0 %v59
    %315 = vmatmul.mubr.f32.gmra.mrb[0].mxu0 %v58
    %v316 = vpop.f32.mrb[0].mxu0
    %v317 = vadd.f32 0.0, %v316
    %v318 = vpop.f32.mrb[0].mxu0
    %v319 = vadd.f32 0.0, %v318
    %320 = vmatprep.mubr.f32.mxu0 %v61
    %321 = vmatmul.mubr.f32.gmra.mrb[0].mxu0 %v60
    %v322 = vpop.f32.mrb[0].mxu0
    %v323 = vadd.f32 0.0, %v322
    %v324 = vpop.f32.mrb[0].mxu0
    %v325 = vadd.f32 0.0, %v324
    %326 = vmatprep.mubr.f32.mxu0 %v63
    %327 = vmatmul.mubr.f32.gmra.mrb[0].mxu0 %v62
    %v328 = vpop.f32.mrb[0].mxu0
    %v329 = vadd.f32 0.0, %v328
    %v330 = vpop.f32.mrb[0].mxu0
    %v331 = vadd.f32 0.0, %v330
    %332 = vmatprep.mubr.f32.mxu0 %v65
    %333 = vmatmul.mubr.f32.gmra.mrb[0].mxu0 %v64
    %v334 = vpop.f32.mrb[0].mxu0
    %v335 = vadd.f32 0.0, %v334
    %v336 = vpop.f32.mrb[0].mxu0
    %v337 = vadd.f32 0.0, %v336
    %338 = vmatprep.mubr.f32.mxu0 %v67
    %339 = vmatmul.mubr.f32.gmra.mrb[0].mxu0 %v66
    %v340 = vpop.f32.mrb[0].mxu0
    %v341 = vadd.f32 0.0, %v340
    %v342 = vpop.f32.mrb[0].mxu0
    %v343 = vadd.f32 0.0, %v342
    %344 = vmatprep.mubr.f32.mxu0 %v69
    %345 = vmatmul.mubr.f32.gmra.mrb[0].mxu0 %v68
    %v346 = vpop.f32.mrb[0].mxu0
    %v347 = vadd.f32 0.0, %v346
    %v348 = vpop.f32.mrb[0].mxu0
    %v349 = vadd.f32 0.0, %v348
    %350 = vmatprep.mubr.f32.mxu0 %v71
    %351 = vmatmul.mubr.f32.gmra.mrb[0].mxu0 %v70
    %v352 = vpop.f32.mrb[0].mxu0
    %v353 = vadd.f32 0.0, %v352
    %v354 = vpop.f32.mrb[0].mxu0
    %v355 = vadd.f32 0.0, %v354
    %356 = vmatprep.mubr.f32.mxu0 %v73
    %357 = vmatmul.mubr.f32.gmra.mrb[0].mxu0 %v72
    %v358 = vpop.f32.mrb[0].mxu0
    %v359 = vadd.f32 0.0, %v358
    %v360 = vpop.f32.mrb[0].mxu0
    %v361 = vadd.f32 0.0, %v360
    %362 = vmatprep.mubr.f32.mxu0 %v75
    %363 = vmatmul.mubr.f32.gmra.mrb[0].mxu0 %v74
    %v364 = vpop.f32.mrb[0].mxu0
    %v365 = vadd.f32 0.0, %v364
    %v366 = vpop.f32.mrb[0].mxu0
    %v367 = vadd.f32 0.0, %v366
    %368 = vmatprep.mubr.f32.mxu0 %v77
    %369 = vmatmul.mubr.f32.gmra.mrb[0].mxu0 %v76
    %v370 = vpop.f32.mrb[0].mxu0
    %v371 = vadd.f32 0.0, %v370
    %v372 = vpop.f32.mrb[0].mxu0
    %v373 = vadd.f32 0.0, %v372
    %374 = vmatprep.mubr.f32.mxu0 %v79
    %375 = vmatmul.mubr.f32.gmra.mrb[0].mxu0 %v78
    %v376 = vpop.f32.mrb[0].mxu0
    %v377 = vadd.f32 0.0, %v376
    %v378 = vpop.f32.mrb[0].mxu0
    %v379 = vadd.f32 0.0, %v378
    %380 = vmatprep.mubr.f32.mxu0 %v81
    %381 = vmatmul.mubr.f32.gmra.mrb[0].mxu0 %v80
    %v382 = vpop.f32.mrb[0].mxu0
    %v383 = vadd.f32 0.0, %v382
    %v384 = vpop.f32.mrb[0].mxu0
    %v385 = vadd.f32 0.0, %v384
    %386 = vmatprep.mubr.f32.mxu0 %v83
    %387 = vmatmul.mubr.f32.gmra.mrb[0].mxu0 %v82
    %v388 = vpop.f32.mrb[0].mxu0
    %v389 = vadd.f32 0.0, %v388
    %v390 = vpop.f32.mrb[0].mxu0
    %v391 = vadd.f32 0.0, %v390
    %392 = vmatprep.mubr.f32.mxu0 %v85
    %393 = vmatmul.mubr.f32.gmra.mrb[0].mxu0 %v84
    %v394 = vpop.f32.mrb[0].mxu0
    %v395 = vadd.f32 0.0, %v394
    %v396 = vpop.f32.mrb[0].mxu0
    %v397 = vadd.f32 0.0, %v396
    %398 = vmatprep.mubr.f32.mxu0 %v87
    %399 = vmatmul.mubr.f32.gmra.mrb[0].mxu0 %v86
    %v400 = vpop.f32.mrb[0].mxu0
    %v401 = vadd.f32 0.0, %v400
    %v402 = vpop.f32.mrb[0].mxu0
    %v403 = vadd.f32 0.0, %v402
    %404 = vmatprep.mubr.f32.mxu0 %v89
    %405 = vmatmul.mubr.f32.gmra.mrb[0].mxu0 %v88
    %v406 = vpop.f32.mrb[0].mxu0
    %v407 = vadd.f32 0.0, %v406
    %v408 = vpop.f32.mrb[0].mxu0
    %v409 = vadd.f32 0.0, %v408
    %410 = vdwg.mxu0
    %411 = vst [vmem:[#allocation5] sm:$0xff] %v221
    %412 = vst [vmem:[#allocation5 + $0x8] sm:$0xff] %v223
    %413 = vst [vmem:[#allocation5 + $0x10] sm:$0xff] %v227
    %414 = vst [vmem:[#allocation5 + $0x18] sm:$0xff] %v229
    %415 = vst [vmem:[#allocation5 + $0x20] sm:$0xff] %v233
    %416 = vst [vmem:[#allocation5 + $0x28] sm:$0xff] %v235
    %417 = vst [vmem:[#allocation5 + $0x30] sm:$0xff] %v239
    %418 = vst [vmem:[#allocation5 + $0x38] sm:$0xff] %v241
    %419 = vst [vmem:[#allocation5 + $0x40] sm:$0xff] %v245
    %420 = vst [vmem:[#allocation5 + $0x48] sm:$0xff] %v247
    %421 = vst [vmem:[#allocation5 + $0x50] sm:$0xff] %v251
    %422 = vst [vmem:[#allocation5 + $0x58] sm:$0xff] %v253
    %423 = vst [vmem:[#allocation5 + $0x60] sm:$0xff] %v257
    %424 = vst [vmem:[#allocation5 + $0x68] sm:$0xff] %v259
    %425 = vst [vmem:[#allocation5 + $0x70] sm:$0xff] %v263
    %426 = vst [vmem:[#allocation5 + $0x78] sm:$0xff] %v265
    %427 = vst [vmem:[#allocation5 + $0x80] sm:$0xff] %v269
    %428 = vst [vmem:[#allocation5 + $0x88] sm:$0xff] %v271
    %429 = vst [vmem:[#allocation5 + $0x90] sm:$0xff] %v275
    %430 = vst [vmem:[#allocation5 + $0x98] sm:$0xff] %v277
    %431 = vst [vmem:[#allocation5 + $0xa0] sm:$0xff] %v281
    %432 = vst [vmem:[#allocation5 + $0xa8] sm:$0xff] %v283
    %433 = vst [vmem:[#allocation5 + $0xb0] sm:$0xff] %v287
    %434 = vst [vmem:[#allocation5 + $0xb8] sm:$0xff] %v289
    %435 = vst [vmem:[#allocation5 + $0xc0] sm:$0xff] %v293
    %436 = vst [vmem:[#allocation5 + $0xc8] sm:$0xff] %v295
    %437 = vst [vmem:[#allocation5 + $0xd0] sm:$0xff] %v299
    %438 = vst [vmem:[#allocation5 + $0xd8] sm:$0xff] %v301
    %439 = vst [vmem:[#allocation5 + $0xe0] sm:$0xff] %v305
    %440 = vst [vmem:[#allocation5 + $0xe8] sm:$0xff] %v307
    %441 = vst [vmem:[#allocation5 + $0xf0] sm:$0xff] %v311
    %442 = vst [vmem:[#allocation5 + $0xf8] sm:$0xff] %v313
    %443 = vst [vmem:[#allocation5 + $0x100] sm:$0xff] %v317
    %444 = vst [vmem:[#allocation5 + $0x108] sm:$0xff] %v319
    %445 = vst [vmem:[#allocation5 + $0x110] sm:$0xff] %v323
    %446 = vst [vmem:[#allocation5 + $0x118] sm:$0xff] %v325
    %447 = vst [vmem:[#allocation5 + $0x120] sm:$0xff] %v329
    %448 = vst [vmem:[#allocation5 + $0x128] sm:$0xff] %v331
    %449 = vst [vmem:[#allocation5 + $0x130] sm:$0xff] %v335
    %450 = vst [vmem:[#allocation5 + $0x138] sm:$0xff] %v337
    %451 = vst [vmem:[#allocation5 + $0x140] sm:$0xff] %v341
    %452 = vst [vmem:[#allocation5 + $0x148] sm:$0xff] %v343
    %453 = vst [vmem:[#allocation5 + $0x150] sm:$0xff] %v347
    %454 = vst [vmem:[#allocation5 + $0x158] sm:$0xff] %v349
    %455 = vst [vmem:[#allocation5 + $0x160] sm:$0xff] %v353
    %456 = vst [vmem:[#allocation5 + $0x168] sm:$0xff] %v355
    %457 = vst [vmem:[#allocation5 + $0x170] sm:$0xff] %v359
    %458 = vst [vmem:[#allocation5 + $0x178] sm:$0xff] %v361
    %459 = vst [vmem:[#allocation5 + $0x180] sm:$0xff] %v365
    %460 = vst [vmem:[#allocation5 + $0x188] sm:$0xff] %v367
    %461 = vst [vmem:[#allocation5 + $0x190] sm:$0xff] %v371
    %462 = vst [vmem:[#allocation5 + $0x198] sm:$0xff] %v373
    %463 = vst [vmem:[#allocation5 + $0x1a0] sm:$0xff] %v377
    %464 = vst [vmem:[#allocation5 + $0x1a8] sm:$0xff] %v379
    %465 = vst [vmem:[#allocation5 + $0x1b0] sm:$0xff] %v383
    %466 = vst [vmem:[#allocation5 + $0x1b8] sm:$0xff] %v385
    %467 = vst [vmem:[#allocation5 + $0x1c0] sm:$0xff] %v389
    %468 = vst [vmem:[#allocation5 + $0x1c8] sm:$0xff] %v391
    %469 = vst [vmem:[#allocation5 + $0x1d0] sm:$0xff] %v395
    %470 = vst [vmem:[#allocation5 + $0x1d8] sm:$0xff] %v397
    %471 = vst [vmem:[#allocation5 + $0x1e0] sm:$0xff] %v401
    %472 = vst [vmem:[#allocation5 + $0x1e8] sm:$0xff] %v403
    %473 = vst [vmem:[#allocation5 + $0x1f0] sm:$0xff] %v407
    %474 = vst [vmem:[#allocation5 + $0x1f8] sm:$0xff] %v409
    // Predicated region
    $region14: #{branch_1_fun.1} parent=1 // pred_check
      _
    $region15: #{branch_1_fun.1} parent=1 // pred_check_branch
      %476 = sbr.rel (0) target = $region17
    $region16: #{branch_1_fun.1} parent=1 // pred_region
      %s478 = ssub.s32 8192, 8192
      %479 = vsyncadd [#allocation4], %s478
      %s480 = sshll.u32 [#allocation5], 4
      %s481 = int_to_ptr.vmem [resolvable:$true] %s480
      %486 = dma.vmem_to_hbm [thread:$0]  %s481, 8192, %s2, [#allocation4], 256, 256, 16
    $region17: #{branch_1_fun.1} parent=1 // pred_fallthru
      _
    // Predicated region
    $region18: #{branch_1_fun.1} parent=1 // pred_check
      _
    $region19: #{branch_1_fun.1} parent=1 // pred_check_branch
      %488 = sbr.rel (0) target = $region21
    $region20: #{branch_1_fun.1} parent=1 // pred_region
      %489 = dma.done [#allocation4], 8192
    $region21: #{branch_1_fun.1} parent=1 // pred_fallthru
      _
    %490 = vsyncpa [#allocation3], 1
    %491 = vsyncpa [#allocation4], 1

</llo_original>
